<compile_context>
chip_gen: v6e
topology: v6e:2x2x1
jax: 0.10.0
libtpu: 0.0.40
codegen_flags: <defaults>
</compile_context>

<pallas_src>
import jax
import jax.numpy as jnp
from jax.experimental import pallas as pl
from jax.experimental.pallas import tpu as pltpu

ACKS = 10
STATE_DIM = 2 + 2 + ACKS * 8   # 84
HID = 128
MIN_LOG_STD = -10.0
MAX_LOG_STD = 2.0


def actor_kernel(x_ref, w1_ref, b1_ref, w2_ref, b2_ref, wh_ref, bh_ref, out_ref):
    x = x_ref[...]                                                   # (TB, 84)

    # fc1 + relu (MXU, K = 84 -- Mosaic lane-pads the contraction internally)
    w1 = w1_ref[...]
    h1 = jnp.dot(x.astype(w1.dtype), w1,
                 preferred_element_type=jnp.float32) + b1_ref[...]
    h1 = jnp.maximum(h1, 0.0)

    # fc2 + relu (MXU)
    w2 = w2_ref[...]
    h2 = jnp.dot(h1.astype(w2.dtype), w2,
                 preferred_element_type=jnp.float32) + b2_ref[...]
    h2 = jnp.maximum(h2, 0.0)                                        # (TB, 128)

    # Heads off the MXU: VPU multiply with the broadcast head-weight row,
    # then an XLU cross-lane reduction.  mu = col 0, log_std = col 1.
    mu = jnp.sum(h2 * wh_ref[0:1, :], axis=-1, keepdims=True) + bh_ref[0:1, 0:1]
    ls = jnp.sum(h2 * wh_ref[1:2, :], axis=-1, keepdims=True) + bh_ref[0:1, 1:2]
    ls = jnp.clip(jnp.maximum(ls, 0.0), MIN_LOG_STD, MAX_LOG_STD)

    out_ref[:, 0:1] = mu.astype(out_ref.dtype)
    out_ref[:, 1:2] = ls.astype(out_ref.dtype)


def _pick_tb(B, block_b):
    """Batch tile: multiple of 8 (or == B when B <= 8); aim for >= 2 grid
    steps so the 'parallel' axis can shard across both v7x TensorCores."""
    if B <= 8:
        return B
    target = min(block_b, (B + 1) // 2)
    tb = ((target + 7) // 8) * 8
    if tb > B:                      # keep the tile within the array
        tb = (B // 8) * 8
    return max(tb, 8)


def actor_forward(x, kparams, *, block_b=2048):
    """x: (B, STATE_DIM) float32, kparams from prepare_params().
    Returns (mu, log_std), each (B, 1) float32."""
    B, S = x.shape
    w1, b1, w2, b2, w_heads, b_heads = kparams

    tb = _pick_tb(B, block_b)
    nb = pl.cdiv(B, tb)             # last block may be partial (masked store)

    def const(shape):
        n = len(shape)
        return pl.BlockSpec(shape, lambda i, _n=n: (0,) * _n)

    out = pl.pallas_call(
        actor_kernel,
        out_shape=jax.ShapeDtypeStruct((B, 2), jnp.float32),
        grid=(nb,),
        in_specs=[
            pl.BlockSpec((tb, S), lambda i: (i, 0)),    # x: pipelined over batch
            const(w1.shape), const(b1.shape),           # weights: VMEM-resident
            const(w2.shape), const(b2.shape),
            const(w_heads.shape), const(b_heads.shape),
        ],
        out_specs=pl.BlockSpec((tb, 2), lambda i: (i, 0)),
        compiler_params=pltpu.CompilerParams(
            dimension_semantics=("parallel",)),
        # VMEM use at tb=2048 is ~3 MiB incl. double buffers; no explicit
        # vmem_limit_bytes needed on any generation at these sizes.
    )(x, w1, b1, w2, b2, w_heads, b_heads)

    return out[:, 0:1], out[:, 1:2]


def init_params(key):
    """Deterministic PyTorch-Linear-style init (uniform +/- 1/sqrt(fan_in)),
    with fc weights stored as [in, out]."""
    ks = jax.random.split(key, 8)

    def linear(kw, kb, fan_in, fan_out):
        bound = 1.0 / jnp.sqrt(jnp.float32(fan_in))
        w = jax.random.uniform(kw, (fan_in, fan_out), jnp.float32, -bound, bound)
        b = jax.random.uniform(kb, (1, fan_out), jnp.float32, -bound, bound)
        return w, b

    w1, b1 = linear(ks[0], ks[1], STATE_DIM, HID)
    w2, b2 = linear(ks[2], ks[3], HID, HID)
    wmu, bmu = linear(ks[4], ks[5], HID, 1)
    wls, bls = linear(ks[6], ks[7], HID, 1)
    return (w1, b1, w2, b2, wmu, bmu, wls, bls)


def prepare_params(params, *, use_bf16=False):
    """One-time (out-of-the-hot-path) packing of parameters for the kernel:
    head weights stacked as (2, HID) rows, head biases as (1, 2)."""
    w1, b1, w2, b2, wmu, bmu, wls, bls = params
    w_heads = jnp.concatenate([wmu, wls], axis=1).T       # (2, HID)
    b_heads = jnp.concatenate([bmu, bls], axis=1)         # (1, 2)
    if use_bf16:
        # bf16 matmul weights (epilogue / biases / head rows stay f32).
        w1 = w1.astype(jnp.bfloat16)
        w2 = w2.astype(jnp.bfloat16)
    return (w1, b1, w2, b2, w_heads, b_heads)


def actor_ref(x, params):
    """Pure-JAX reference (matches the PyTorch Actor.forward)."""
    w1, b1, w2, b2, wmu, bmu, wls, bls = params
    h1 = jnp.maximum(x @ w1 + b1, 0.0)
    h2 = jnp.maximum(h1 @ w2 + b2, 0.0)
    mu = h2 @ wmu + bmu
    # Faithful to the PyTorch spec: relu on the log_std head, then clamp.
    ls = jnp.clip(jnp.maximum(h2 @ wls + bls, 0.0), MIN_LOG_STD, MAX_LOG_STD)
    return mu, ls


if __name__ == "__main__":
    key = jax.random.PRNGKey(0)
    k_param, k1, k2, k3 = jax.random.split(key, 4)

    params = init_params(k_param)
    kparams = prepare_params(params)          # hoisted out of the per-call path
    fwd = jax.jit(actor_forward)

    # B=8: single tile; B=5: tiny batch (tb == B); B=13: partial last block.
    for B, kx in [(8, k1), (5, k2), (13, k3)]:
        x = jax.random.normal(kx, (B, STATE_DIM), jnp.float32)
        mu, log_std = fwd(x, kparams)
        jax.block_until_ready((mu, log_std))
        mu_r, ls_r = actor_ref(x, params)
        assert mu.shape == (B, 1) and log_std.shape == (B, 1)
        assert jnp.allclose(mu, mu_r, atol=1e-5, rtol=1e-5), f"mu mismatch B={B}"
        assert jnp.allclose(log_std, ls_r, atol=1e-5, rtol=1e-5), f"log_std mismatch B={B}"

    print("KERNEL_OK")
</pallas_src>

<mosaic_0001>
module attributes {stable_mosaic.version = 11 : i64} {
  func.func @actor_kernel(%arg0: i32, %arg1: memref<8x84xf32, #tpu.memory_space<vmem>>, %arg2: memref<84x128xf32, #tpu.memory_space<vmem>>, %arg3: memref<1x128xf32, #tpu.memory_space<vmem>>, %arg4: memref<128x128xf32, #tpu.memory_space<vmem>>, %arg5: memref<1x128xf32, #tpu.memory_space<vmem>>, %arg6: memref<2x128xf32, #tpu.memory_space<vmem>>, %arg7: memref<1x2xf32, #tpu.memory_space<vmem>>, %arg8: memref<8x2xf32, #tpu.memory_space<vmem>>) attributes {dimension_semantics = [#tpu.dimension_semantics<parallel>], iteration_bounds = array<i64: 1>, scalar_prefetch = 0 : i64, scratch_operands = 0 : i64, tpu.core_type = #tpu.core_type<tc>, window_params = [{transform_indices = @transform_0, window_bounds = array<i64: 8, 84>}, {pipeline_mode = #tpu.pipeline_mode<synchronous>, transform_indices = @transform_1, window_bounds = array<i64: 84, 128>}, {pipeline_mode = #tpu.pipeline_mode<synchronous>, transform_indices = @transform_2, window_bounds = array<i64: 1, 128>}, {pipeline_mode = #tpu.pipeline_mode<synchronous>, transform_indices = @transform_3, window_bounds = array<i64: 128, 128>}, {pipeline_mode = #tpu.pipeline_mode<synchronous>, transform_indices = @transform_4, window_bounds = array<i64: 1, 128>}, {pipeline_mode = #tpu.pipeline_mode<synchronous>, transform_indices = @transform_5, window_bounds = array<i64: 2, 128>}, {pipeline_mode = #tpu.pipeline_mode<synchronous>, transform_indices = @transform_6, window_bounds = array<i64: 1, 2>}, {transform_indices = @transform_7, window_bounds = array<i64: 8, 2>}]} {
    %c0 = arith.constant 0 : index
    %c0_0 = arith.constant 0 : index
    %0 = vector.load %arg1[%c0, %c0_0] : memref<8x84xf32, #tpu.memory_space<vmem>>, vector<8x84xf32>
    %c0_1 = arith.constant 0 : index
    %c0_2 = arith.constant 0 : index
    %1 = vector.load %arg2[%c0_1, %c0_2] : memref<84x128xf32, #tpu.memory_space<vmem>>, vector<84x128xf32>
    %cst = arith.constant dense<0.000000e+00> : vector<8x128xf32>
    %2 = tpu.matmul %0, %1, %cst {dimension_numbers = #tpu.dot_dimension_numbers<[1], [0], [0], [1], [0, 0, 1, 1], [], []>} : vector<8x84xf32>, vector<84x128xf32>, vector<8x128xf32> -> vector<8x128xf32>
    %c0_3 = arith.constant 0 : index
    %c0_4 = arith.constant 0 : index
    %3 = vector.load %arg3[%c0_3, %c0_4] : memref<1x128xf32, #tpu.memory_space<vmem>>, vector<1x128xf32>
    %4 = vector.broadcast %3 : vector<1x128xf32> to vector<8x128xf32>
    %5 = arith.addf %2, %4 : vector<8x128xf32>
    %cst_5 = arith.constant 0.000000e+00 : f32
    %6 = vector.broadcast %cst_5 : f32 to vector<8x128xf32>
    %7 = arith.maximumf %5, %6 : vector<8x128xf32>
    %c0_6 = arith.constant 0 : index
    %c0_7 = arith.constant 0 : index
    %8 = vector.load %arg4[%c0_6, %c0_7] : memref<128x128xf32, #tpu.memory_space<vmem>>, vector<128x128xf32>
    %cst_8 = arith.constant dense<0.000000e+00> : vector<8x128xf32>
    %9 = tpu.matmul %7, %8, %cst_8 {dimension_numbers = #tpu.dot_dimension_numbers<[1], [0], [0], [1], [0, 0, 1, 1], [], []>} : vector<8x128xf32>, vector<128x128xf32>, vector<8x128xf32> -> vector<8x128xf32>
    %c0_9 = arith.constant 0 : index
    %c0_10 = arith.constant 0 : index
    %10 = vector.load %arg5[%c0_9, %c0_10] : memref<1x128xf32, #tpu.memory_space<vmem>>, vector<1x128xf32>
    %11 = vector.broadcast %10 : vector<1x128xf32> to vector<8x128xf32>
    %12 = arith.addf %9, %11 : vector<8x128xf32>
    %cst_11 = arith.constant 0.000000e+00 : f32
    %13 = vector.broadcast %cst_11 : f32 to vector<8x128xf32>
    %14 = arith.maximumf %12, %13 : vector<8x128xf32>
    %c0_12 = arith.constant 0 : index
    %c0_13 = arith.constant 0 : index
    %15 = vector.load %arg6[%c0_12, %c0_13] : memref<2x128xf32, #tpu.memory_space<vmem>>, vector<1x128xf32>
    %16 = vector.broadcast %15 : vector<1x128xf32> to vector<8x128xf32>
    %17 = arith.mulf %14, %16 : vector<8x128xf32>
    %cst_14 = arith.constant dense<0.000000e+00> : vector<8xf32>
    %18 = vector.multi_reduction <add>, %17, %cst_14 [1] : vector<8x128xf32> to vector<8xf32>
    %19 = vector.shape_cast %18 : vector<8xf32> to vector<8x1xf32>
    %c0_15 = arith.constant 0 : index
    %c0_16 = arith.constant 0 : index
    %20 = vector.load %arg7[%c0_15, %c0_16] : memref<1x2xf32, #tpu.memory_space<vmem>>, vector<1x1xf32>
    %21 = vector.broadcast %20 : vector<1x1xf32> to vector<8x1xf32>
    %22 = arith.addf %19, %21 : vector<8x1xf32>
    %c1 = arith.constant 1 : index
    %c0_17 = arith.constant 0 : index
    %23 = vector.load %arg6[%c1, %c0_17] : memref<2x128xf32, #tpu.memory_space<vmem>>, vector<1x128xf32>
    %24 = vector.broadcast %23 : vector<1x128xf32> to vector<8x128xf32>
    %25 = arith.mulf %14, %24 : vector<8x128xf32>
    %cst_18 = arith.constant dense<0.000000e+00> : vector<8xf32>
    %26 = vector.multi_reduction <add>, %25, %cst_18 [1] : vector<8x128xf32> to vector<8xf32>
    %27 = vector.shape_cast %26 : vector<8xf32> to vector<8x1xf32>
    %c0_19 = arith.constant 0 : index
    %c1_20 = arith.constant 1 : index
    %28 = vector.load %arg7[%c0_19, %c1_20] : memref<1x2xf32, #tpu.memory_space<vmem>>, vector<1x1xf32>
    %29 = vector.broadcast %28 : vector<1x1xf32> to vector<8x1xf32>
    %30 = arith.addf %27, %29 : vector<8x1xf32>
    %cst_21 = arith.constant 0.000000e+00 : f32
    %31 = vector.broadcast %cst_21 : f32 to vector<8x1xf32>
    %32 = arith.maximumf %30, %31 : vector<8x1xf32>
    %cst_22 = arith.constant -1.000000e+01 : f32
    %cst_23 = arith.constant 2.000000e+00 : f32
    %33 = vector.broadcast %cst_22 : f32 to vector<8x1xf32>
    %34 = arith.maximumf %33, %32 : vector<8x1xf32>
    %35 = vector.broadcast %cst_23 : f32 to vector<8x1xf32>
    %36 = arith.minimumf %35, %34 : vector<8x1xf32>
    %c0_24 = arith.constant 0 : index
    %c0_25 = arith.constant 0 : index
    %37 = vector.load %arg8[%c0_24, %c0_25] : memref<8x2xf32, #tpu.memory_space<vmem>>, vector<8x1xf32>
    tpu.vector_store %arg8[%c0_24, %c0_25], %22 {strides = array<i32>} : memref<8x2xf32, #tpu.memory_space<vmem>>, vector<8x1xf32>,
    %c0_26 = arith.constant 0 : index
    %c1_27 = arith.constant 1 : index
    %38 = vector.load %arg8[%c0_26, %c1_27] : memref<8x2xf32, #tpu.memory_space<vmem>>, vector<8x1xf32>
    tpu.vector_store %arg8[%c0_26, %c1_27], %36 {strides = array<i32>} : memref<8x2xf32, #tpu.memory_space<vmem>>, vector<8x1xf32>,
    return
  }
  func.func @transform_0(%arg0: i32) -> (i32, i32) {
    %c0_i32 = arith.constant 0 : i32
    %c0_i32_0 = arith.constant 0 : i32
    return %arg0, %c0_i32 : i32, i32
  }
  func.func @transform_1(%arg0: i32) -> (i32, i32) {
    %c0_i32 = arith.constant 0 : i32
    %c0_i32_0 = arith.constant 0 : i32
    %c0_i32_1 = arith.constant 0 : i32
    return %c0_i32, %c0_i32_0 : i32, i32
  }
  func.func @transform_2(%arg0: i32) -> (i32, i32) {
    %c0_i32 = arith.constant 0 : i32
    %c0_i32_0 = arith.constant 0 : i32
    %c0_i32_1 = arith.constant 0 : i32
    return %c0_i32, %c0_i32_0 : i32, i32
  }
  func.func @transform_3(%arg0: i32) -> (i32, i32) {
    %c0_i32 = arith.constant 0 : i32
    %c0_i32_0 = arith.constant 0 : i32
    %c0_i32_1 = arith.constant 0 : i32
    return %c0_i32, %c0_i32_0 : i32, i32
  }
  func.func @transform_4(%arg0: i32) -> (i32, i32) {
    %c0_i32 = arith.constant 0 : i32
    %c0_i32_0 = arith.constant 0 : i32
    %c0_i32_1 = arith.constant 0 : i32
    return %c0_i32, %c0_i32_0 : i32, i32
  }
  func.func @transform_5(%arg0: i32) -> (i32, i32) {
    %c0_i32 = arith.constant 0 : i32
    %c0_i32_0 = arith.constant 0 : i32
    %c0_i32_1 = arith.constant 0 : i32
    return %c0_i32, %c0_i32_0 : i32, i32
  }
  func.func @transform_6(%arg0: i32) -> (i32, i32) {
    %c0_i32 = arith.constant 0 : i32
    %c0_i32_0 = arith.constant 0 : i32
    %c0_i32_1 = arith.constant 0 : i32
    return %c0_i32, %c0_i32_0 : i32, i32
  }
  func.func @transform_7(%arg0: i32) -> (i32, i32) {
    %c0_i32 = arith.constant 0 : i32
    %c0_i32_0 = arith.constant 0 : i32
    return %arg0, %c0_i32 : i32, i32
  }
}

</mosaic_0001>

<llo_original>
// kernel: actor_forward.1
$region0: #{actor_forward.1}
  #allocation0 [shape = 'u32[]', space=smem, size = 0x4, offset = 0x4, fixed_abs, tag = 'smem constant byte address 0x4 - core index']
  #allocation1 [shape = 'u32[144,128]{1,0:T(1,128)}', space=vmem, size = 0x12000, scoped, tag = 'internal scratch']
  %s0 = inlined_call_operand.hbm [shape: f32[8,84], index: 0, kind: input, shape index: {}]
  %s1 = inlined_call_operand.hbm [shape: f32[84,128], index: 1, kind: input, shape index: {}]
  %s2 = inlined_call_operand.vmem [shape: f32[1,128], index: 2, kind: input, shape index: {}]
  %s3 = inlined_call_operand.hbm [shape: f32[128,128], index: 3, kind: input, shape index: {}]
  %s4 = inlined_call_operand.vmem [shape: f32[1,128], index: 4, kind: input, shape index: {}]
  %s5 = inlined_call_operand.vmem [shape: f32[2,128], index: 5, kind: input, shape index: {}]
  %s6 = inlined_call_operand.vmem [shape: f32[1,2], index: 6, kind: input, shape index: {}]
  %s7 = inlined_call_operand.vmem [shape: f32[8,2], index: 7, kind: output, shape index: {}]
  %s8 = sld [smem:[#allocation0]]
  $region50: #{actor_forward.1} parent=0
    _
  %s10 = ssub.s32 1, %s8
  %s11 = scalar_select 0, %s10, %s8
  $region1: #{actor_forward.1} parent=0
    #allocation2 [shape = 'u8[4096]{0}', space=vmem, size = 0x1000, scoped, tag = 'input window, operand 0, single buffered']
    #allocation3 [shape = 's32[1]{0}', space=sflag, size = 0x4, scoped, tag = 'scoped memory for actor_forward.1']
    #allocation4 [shape = 'u8[45056]{0}', space=vmem, size = 0xb000, scoped, tag = 'input window, operand 1, single buffered']
    #allocation5 [shape = 's32[1]{0}', space=sflag, size = 0x4, scoped, tag = 'scoped memory for actor_forward.1']
    #allocation6 [shape = 'u8[65536]{0}', space=vmem, size = 0x10000, scoped, tag = 'input window, operand 3, single buffered']
    %12 = vsyncpa [#allocation3], 0
    %13 = vsyncpa [#allocation5], 0
    // Predicated region
    $region2: #{actor_forward.1} parent=1 // pred_check
      _
    $region3: #{actor_forward.1} parent=1 // pred_check_branch
      %15 = sbr.rel (0) target = $region5
    $region4: #{actor_forward.1} parent=1 // pred_region
      %s17 = ssub.s32 128, 128
      %18 = vsyncadd [#allocation3], %s17
      %s20 = sshll.u32 [#allocation2], 4
      %s21 = int_to_ptr.vmem [resolvable:$true] %s20
      %23 = dma.hbm_to_vmem [thread:$0]  %s0, 128, %s21, [#allocation3]
    $region5: #{actor_forward.1} parent=1 // pred_fallthru
      _
    // Predicated region
    $region6: #{actor_forward.1} parent=1 // pred_check
      _
    $region7: #{actor_forward.1} parent=1 // pred_check_branch
      %25 = sbr.rel (0) target = $region9
    $region8: #{actor_forward.1} parent=1 // pred_region
      %s27 = ssub.s32 1408, 1408
      %28 = vsyncadd [#allocation5], %s27
      %s29 = sshll.u32 [#allocation4], 4
      %s30 = int_to_ptr.vmem [resolvable:$true] %s29
      %35 = dma.hbm_to_vmem [thread:$0]  %s1, 1408, %s30, [#allocation5], 128, 128, 8
    $region9: #{actor_forward.1} parent=1 // pred_fallthru
      _
    // Predicated region
    $region10: #{actor_forward.1} parent=1 // pred_check
      _
    $region11: #{actor_forward.1} parent=1 // pred_check_branch
      %37 = sbr.rel (0) target = $region13
    $region12: #{actor_forward.1} parent=1 // pred_region
      _
    $region13: #{actor_forward.1} parent=1 // pred_fallthru
      _
    // Predicated region
    $region14: #{actor_forward.1} parent=1 // pred_check
      _
    $region15: #{actor_forward.1} parent=1 // pred_check_branch
      %39 = sbr.rel (0) target = $region17
    $region16: #{actor_forward.1} parent=1 // pred_region
      %s41 = ssub.s32 2048, 2048
      %42 = vsyncadd [#allocation5], %s41
      %s43 = sshll.u32 [#allocation6], 4
      %s44 = int_to_ptr.vmem [resolvable:$true] %s43
      %49 = dma.hbm_to_vmem [thread:$0]  %s3, 2048, %s44, [#allocation5], 128, 128, 8
    $region17: #{actor_forward.1} parent=1 // pred_fallthru
      _
    // Predicated region
    $region18: #{actor_forward.1} parent=1 // pred_check
      _
    $region19: #{actor_forward.1} parent=1 // pred_check_branch
      %51 = sbr.rel (0) target = $region21
    $region20: #{actor_forward.1} parent=1 // pred_region
      _
    $region21: #{actor_forward.1} parent=1 // pred_fallthru
      _
    // Predicated region
    $region22: #{actor_forward.1} parent=1 // pred_check
      _
    $region23: #{actor_forward.1} parent=1 // pred_check_branch
      %53 = sbr.rel (0) target = $region25
    $region24: #{actor_forward.1} parent=1 // pred_region
      _
    $region25: #{actor_forward.1} parent=1 // pred_fallthru
      _
    // Predicated region
    $region26: #{actor_forward.1} parent=1 // pred_check
      _
    $region27: #{actor_forward.1} parent=1 // pred_check_branch
      %55 = sbr.rel (0) target = $region29
    $region28: #{actor_forward.1} parent=1 // pred_region
      _
    $region29: #{actor_forward.1} parent=1 // pred_fallthru
      _
    // Predicated region
    $region30: #{actor_forward.1} parent=1 // pred_check
      _
    $region31: #{actor_forward.1} parent=1 // pred_check_branch
      %57 = sbr.rel (0) target = $region33
    $region32: #{actor_forward.1} parent=1 // pred_region
      %58 = dma.done [#allocation3], 128
    $region33: #{actor_forward.1} parent=1 // pred_fallthru
      _
    // Predicated region
    $region34: #{actor_forward.1} parent=1 // pred_check
      _
    $region35: #{actor_forward.1} parent=1 // pred_check_branch
      %60 = sbr.rel (0) target = $region37
    $region36: #{actor_forward.1} parent=1 // pred_region
      %61 = dma.done [#allocation5], 1408
    $region37: #{actor_forward.1} parent=1 // pred_fallthru
      _
    // Predicated region
    $region38: #{actor_forward.1} parent=1 // pred_check
      _
    $region39: #{actor_forward.1} parent=1 // pred_check_branch
      %63 = sbr.rel (0) target = $region41
    $region40: #{actor_forward.1} parent=1 // pred_region
      %64 = dma.done [#allocation5], 2048
    $region41: #{actor_forward.1} parent=1 // pred_fallthru
      _
    %v65 = vld [vmem:[#allocation2] sm:$0xff]
    %v66 = vld [vmem:[#allocation4] sm:$0xff]
    %v67 = vld [vmem:[#allocation4 + $0x8] sm:$0xff]
    %v68 = vld [vmem:[#allocation4 + $0x10] sm:$0xff]
    %v69 = vld [vmem:[#allocation4 + $0x18] sm:$0xff]
    %v70 = vld [vmem:[#allocation4 + $0x20] sm:$0xff]
    %v71 = vld [vmem:[#allocation4 + $0x28] sm:$0xff]
    %v72 = vld [vmem:[#allocation4 + $0x30] sm:$0xff]
    %v73 = vld [vmem:[#allocation4 + $0x38] sm:$0xff]
    %v74 = vld [vmem:[#allocation4 + $0x40] sm:$0xff]
    %v75 = vld [vmem:[#allocation4 + $0x48] sm:$0xff]
    %v76 = vld [vmem:[#allocation4 + $0x50] sm:$0xf]
    %v77 = vld [vmem:[%s2] sm:$0x1]
    %v79 = vlaneseq
    %v80 = vshrl.u32 %v79, 7
    %v81 = vsub.s32 0, %v80
    %v82 = vrot.slane %v77, %v81
    %vm84 = vcmask 687104
    %v86 = vsel %vm84, %v65, 0
    %vm88 = vcmask 1043456
    %v90 = vsel %vm88, %v76, 0
    %92 = vmatprep.subr.mxu0 0.0
    %93 = vmatpush1.msra.mxu0 0.0
    %94 = vmatprep.subr.mxu0 0.0
    %95 = vmatpush1.msra.mxu0 0.0
    %96 = vmatprep.subr.mxu0 0.0
    %97 = vmatpush1.msra.mxu0 0.0
    %98 = vmatprep.subr.mxu0 0.0
    %99 = vmatpush1.msra.mxu0 0.0
    %100 = vmatprep.subr.mxu0 0.0
    %101 = vmatpush1.msra.mxu0 0.0
    %102 = vmatprep.subr.mxu0 0.0
    %103 = vmatpush1.msra.mxu0 %v90
    %104 = vmatprep.subr.mxu0 0.0
    %105 = vmatpush1.msra.mxu0 %v75
    %106 = vmatprep.subr.mxu0 0.0
    %107 = vmatpush1.msra.mxu0 %v74
    %108 = vmatprep.subr.mxu0 0.0
    %109 = vmatpush1.msra.mxu0 %v73
    %110 = vmatprep.subr.mxu0 0.0
    %111 = vmatpush1.msra.mxu0 %v72
    %112 = vmatprep.subr.mxu0 0.0
    %113 = vmatpush1.msra.mxu0 %v71
    %114 = vmatprep.subr.mxu0 0.0
    %115 = vmatpush1.msra.mxu0 %v70
    %116 = vmatprep.subr.mxu0 0.0
    %117 = vmatpush1.msra.mxu0 %v69
    %118 = vmatprep.subr.mxu0 0.0
    %119 = vmatpush1.msra.mxu0 %v68
    %120 = vmatprep.subr.mxu0 0.0
    %121 = vmatpush1.msra.mxu0 %v67
    %122 = vmatprep.subr.mxu0 0.0
    %123 = vmatpush1.msra.mxu0 %v66
    %124 = vmatprep.subr.mxu0 0.0
    %125 = vmatpush2.msra.mxu0 0.0
    %126 = vmatprep.subr.mxu0 0.0
    %127 = vmatpush2.msra.mxu0 0.0
    %128 = vmatprep.subr.mxu0 0.0
    %129 = vmatpush2.msra.mxu0 0.0
    %130 = vmatprep.subr.mxu0 0.0
    %131 = vmatpush2.msra.mxu0 0.0
    %132 = vmatprep.subr.mxu0 0.0
    %133 = vmatpush2.msra.mxu0 0.0
    %134 = vmatprep.subr.mxu0 0.0
    %135 = vmatpush2.msra.mxu0 0.0
    %136 = vmatprep.subr.mxu0 0.0
    %137 = vmatpush2.msra.mxu0 0.0
    %138 = vmatprep.subr.mxu0 0.0
    %139 = vmatpush2.msra.mxu0 0.0
    %140 = vmatprep.subr.mxu0 0.0
    %141 = vmatpush2.msra.mxu0 0.0
    %142 = vmatprep.subr.mxu0 0.0
    %143 = vmatpush2.msra.mxu0 0.0
    %144 = vmatprep.subr.mxu0 0.0
    %145 = vmatpush2.msra.mxu0 0.0
    %146 = vmatprep.subr.mxu0 0.0
    %147 = vmatpush2.msra.mxu0 0.0
    %148 = vmatprep.subr.mxu0 0.0
    %149 = vmatpush2.msra.mxu0 0.0
    %150 = vmatprep.subr.mxu0 0.0
    %151 = vmatpush2.msra.mxu0 0.0
    %152 = vmatprep.subr.mxu0 0.0
    %153 = vmatpush2.msra.mxu0 0.0
    %154 = vmatprep.subr.mxu0 0.0
    %155 = vmatpush2.msra.mxu0 0.0
    %156 = vmatprep.mubr.f32.mxu0 0.0
    %157 = vmatmul.mubr.f32.gmra.mxu0 %v86
    %v158 = vpop.f32.mrf.mxu0
    %v159 = vadd.f32 %v82, %v158
    %v160 = vpop.f32.mrf.mxu0
    %161 = vdwg.mxu0
    %v162 = vmax.f32 %v159, 0.0
    %v163 = vld [vmem:[#allocation6] sm:$0xff]
    %v164 = vld [vmem:[#allocation6 + $0x8] sm:$0xff]
    %v165 = vld [vmem:[#allocation6 + $0x10] sm:$0xff]
    %v166 = vld [vmem:[#allocation6 + $0x18] sm:$0xff]
    %v167 = vld [vmem:[#allocation6 + $0x20] sm:$0xff]
    %v168 = vld [vmem:[#allocation6 + $0x28] sm:$0xff]
    %v169 = vld [vmem:[#allocation6 + $0x30] sm:$0xff]
    %v170 = vld [vmem:[#allocation6 + $0x38] sm:$0xff]
    %v171 = vld [vmem:[#allocation6 + $0x40] sm:$0xff]
    %v172 = vld [vmem:[#allocation6 + $0x48] sm:$0xff]
    %v173 = vld [vmem:[#allocation6 + $0x50] sm:$0xff]
    %v174 = vld [vmem:[#allocation6 + $0x58] sm:$0xff]
    %v175 = vld [vmem:[#allocation6 + $0x60] sm:$0xff]
    %v176 = vld [vmem:[#allocation6 + $0x68] sm:$0xff]
    %v177 = vld [vmem:[#allocation6 + $0x70] sm:$0xff]
    %v178 = vld [vmem:[#allocation6 + $0x78] sm:$0xff]
    %v179 = vld [vmem:[%s4] sm:$0x1]
    %v181 = vlaneseq
    %v182 = vshrl.u32 %v181, 7
    %v183 = vsub.s32 0, %v182
    %v184 = vrot.slane %v179, %v183
    %186 = vmatprep.subr.mxu0 0.0
    %187 = vmatpush1.msra.mxu0 %v178
    %188 = vmatprep.subr.mxu0 0.0
    %189 = vmatpush1.msra.mxu0 %v177
    %190 = vmatprep.subr.mxu0 0.0
    %191 = vmatpush1.msra.mxu0 %v176
    %192 = vmatprep.subr.mxu0 0.0
    %193 = vmatpush1.msra.mxu0 %v175
    %194 = vmatprep.subr.mxu0 0.0
    %195 = vmatpush1.msra.mxu0 %v174
    %196 = vmatprep.subr.mxu0 0.0
    %197 = vmatpush1.msra.mxu0 %v173
    %198 = vmatprep.subr.mxu0 0.0
    %199 = vmatpush1.msra.mxu0 %v172
    %200 = vmatprep.subr.mxu0 0.0
    %201 = vmatpush1.msra.mxu0 %v171
    %202 = vmatprep.subr.mxu0 0.0
    %203 = vmatpush1.msra.mxu0 %v170
    %204 = vmatprep.subr.mxu0 0.0
    %205 = vmatpush1.msra.mxu0 %v169
    %206 = vmatprep.subr.mxu0 0.0
    %207 = vmatpush1.msra.mxu0 %v168
    %208 = vmatprep.subr.mxu0 0.0
    %209 = vmatpush1.msra.mxu0 %v167
    %210 = vmatprep.subr.mxu0 0.0
    %211 = vmatpush1.msra.mxu0 %v166
    %212 = vmatprep.subr.mxu0 0.0
    %213 = vmatpush1.msra.mxu0 %v165
    %214 = vmatprep.subr.mxu0 0.0
    %215 = vmatpush1.msra.mxu0 %v164
    %216 = vmatprep.subr.mxu0 0.0
    %217 = vmatpush1.msra.mxu0 %v163
    %218 = vmatprep.subr.mxu0 0.0
    %219 = vmatpush2.msra.mxu0 0.0
    %220 = vmatprep.subr.mxu0 0.0
    %221 = vmatpush2.msra.mxu0 0.0
    %222 = vmatprep.subr.mxu0 0.0
    %223 = vmatpush2.msra.mxu0 0.0
    %224 = vmatprep.subr.mxu0 0.0
    %225 = vmatpush2.msra.mxu0 0.0
    %226 = vmatprep.subr.mxu0 0.0
    %227 = vmatpush2.msra.mxu0 0.0
    %228 = vmatprep.subr.mxu0 0.0
    %229 = vmatpush2.msra.mxu0 0.0
    %230 = vmatprep.subr.mxu0 0.0
    %231 = vmatpush2.msra.mxu0 0.0
    %232 = vmatprep.subr.mxu0 0.0
    %233 = vmatpush2.msra.mxu0 0.0
    %234 = vmatprep.subr.mxu0 0.0
    %235 = vmatpush2.msra.mxu0 0.0
    %236 = vmatprep.subr.mxu0 0.0
    %237 = vmatpush2.msra.mxu0 0.0
    %238 = vmatprep.subr.mxu0 0.0
    %239 = vmatpush2.msra.mxu0 0.0
    %240 = vmatprep.subr.mxu0 0.0
    %241 = vmatpush2.msra.mxu0 0.0
    %242 = vmatprep.subr.mxu0 0.0
    %243 = vmatpush2.msra.mxu0 0.0
    %244 = vmatprep.subr.mxu0 0.0
    %245 = vmatpush2.msra.mxu0 0.0
    %246 = vmatprep.subr.mxu0 0.0
    %247 = vmatpush2.msra.mxu0 0.0
    %248 = vmatprep.subr.mxu0 0.0
    %249 = vmatpush2.msra.mxu0 0.0
    %250 = vmatprep.mubr.f32.mxu0 0.0
    %251 = vmatmul.mubr.f32.gmra.mxu0 %v162
    %v252 = vpop.f32.mrf.mxu0
    %v253 = vadd.f32 %v184, %v252
    %v254 = vpop.f32.mrf.mxu0
    %255 = vdwg.mxu0
    %v256 = vmax.f32 %v253, 0.0
    %v257 = vld [vmem:[%s5] sm:$0x1]
    %v258 = vlaneseq
    %v259 = vshrl.u32 %v258, 7
    %v260 = vsub.s32 0, %v259
    %v261 = vrot.slane %v257, %v260
    %v262 = vmul.f32 %v256, %v261
    %263 = vadd.xlane.f32.xlu0 %v262
    %v264 = vpop.xlane.xlu0 %263
    %v265 = vld [vmem:[%s6] sm:$0x1]
    %v267 = vlaneseq
    %v268 = vshrl.u32 %v267, 7
    %v269 = vsub.s32 0, %v268
    %v270 = vrot.slane %v265, %v269
    %v272 = vadd.f32 %v264, %v270
    %v273 = vld [vmem:[%s5 + $0x1] sm:$0x1]
    %v274 = vlaneseq
    %v275 = vshrl.u32 %v274, 7
    %v276 = vsub.s32 0, %v275
    %v277 = vrot.slane %v273, %v276
    %v278 = vmul.f32 %v256, %v277
    %279 = vadd.xlane.f32.xlu0 %v278
    %v280 = vpop.xlane.xlu0 %279
    %v281 = vadd.f32 %v280, %v270
    %v282 = vmax.f32 %v281, 0.0
    %v283 = vmax.f32 %v282, -10.0
    %v284 = vmin.f32 %v283, 2.0
    %vm285 = vcmask 7168
    %286 = vst.msk [vmem:[%s7] sm:$0xff] %vm285, %v272
    %vm287 = vcmask 15368
    %288 = vst.msk [vmem:[%s7] sm:$0xff] %vm287, %v284
    // Predicated region
    $region42: #{actor_forward.1} parent=1 // pred_check
      _
    $region43: #{actor_forward.1} parent=1 // pred_check_branch
      %290 = sbr.rel (0) target = $region45
    $region44: #{actor_forward.1} parent=1 // pred_region
      _
    $region45: #{actor_forward.1} parent=1 // pred_fallthru
      _
    // Predicated region
    $region46: #{actor_forward.1} parent=1 // pred_check
      _
    $region47: #{actor_forward.1} parent=1 // pred_check_branch
      %292 = sbr.rel (0) target = $region49
    $region48: #{actor_forward.1} parent=1 // pred_region
      _
    $region49: #{actor_forward.1} parent=1 // pred_fallthru
      _
    %293 = vsyncpa [#allocation3], 1
    %294 = vsyncpa [#allocation5], 1

</llo_original>
